<compile_context>
chip_gen: v7x
topology: tpu7x:2x2x1
jax: 0.10.0
libtpu: 0.0.40
codegen_flags: <defaults>
</compile_context>

<pallas_src>
import functools
import math

import jax
import jax.numpy as jnp
from jax.experimental import pallas as pl
from jax.experimental.pallas import tpu as pltpu


def _seg_encode_kernel(x_ref, mask_ref, w1_ref, b1_ref, w2_ref, b2_ref,
                       out_ref, *, W, HW):
    # x_ref   : (Bt*C_in, HW)            rows = (image, channel), lanes = H*W
    # mask_ref: (9, HW)                  1.0 where the tap stays inside the image
    # w1_ref  : (9, Bt*C_in, Bt*C_in)    block-diag 3x3 weights, tap-major (kh, kw)
    # b1_ref  : (Bt*C_in, 1)
    # w2_ref  : (Bt*C_out, Bt*C_in)      block-diag 1x1 weights
    # b2_ref  : (Bt*C_out, 1)
    # out_ref : (Bt*C_out, HW)
    x = x_ref[...].astype(jnp.float32)

    # Centre tap (kh=kw=1, t=4): no shift and an all-true mask -> skip both.
    acc = jnp.dot(w1_ref[4].astype(jnp.float32), x,
                  preferred_element_type=jnp.float32)

    t = 0
    for kh in range(3):
        for kw in range(3):
            if kh == 1 and kw == 1:
                t += 1
                continue
            off = (kh - 1) * W + (kw - 1)
            # shifted[:, i] = x[:, i + off]; wrap-around positions are exactly
            # the ones whose boundary mask is 0.
            shifted = pltpu.roll(x, shift=(-off) % HW, axis=1)
            m = mask_ref[pl.ds(t, 1), :].astype(jnp.float32)      # (1, HW)
            acc = acc + jnp.dot(w1_ref[t].astype(jnp.float32), shifted * m,
                                preferred_element_type=jnp.float32)
            t += 1

    h = jnp.maximum(acc + b1_ref[...].astype(jnp.float32), 0.0)
    y = jnp.dot(w2_ref[...].astype(jnp.float32), h,
                preferred_element_type=jnp.float32)
    y = y + b2_ref[...].astype(jnp.float32)
    out_ref[...] = y.astype(out_ref.dtype)


def _choose_batch_tile(B, C_in, C_out, HW, itemsize=4,
                       max_block_bytes=4 * 1024 * 1024):
    """Pick Bt | B with Bt*C_in and Bt*C_out multiples of 8 (dense tiles),
    the double-buffered block within a VMEM budget, preferring >= 2 grid
    steps (v7x megacore) and then the largest Bt (amortize per-step cost)."""
    m1 = 8 // math.gcd(8, C_in)
    m2 = 8 // math.gcd(8, C_out)
    need = m1 * m2 // math.gcd(m1, m2)
    cands = [bt for bt in range(1, B + 1) if B % bt == 0 and bt % need == 0]
    if not cands:
        # Fall back: single block covering the full arrays (always legal).
        return B

    def block_bytes(bt):
        act = 2 * bt * (C_in + C_out) * HW * itemsize          # double-buffered
        wts = (9 * (bt * C_in) ** 2 + bt * C_out * bt * C_in) * itemsize
        return act + wts

    fitting = [bt for bt in cands if block_bytes(bt) <= max_block_bytes] or cands
    multi_step = [bt for bt in fitting if B // bt >= 2]
    pool = multi_step or fitting
    return max(pool)


def seg_encode_v1(x_nchw, w1, b1, w2, b2, *, batch_tile=None):
    """Forward pass of SegEncode_v1.

    x_nchw: (B, C_in, H, W) float32
    w1    : (C_in, C_in, 3, 3)   (PyTorch conv weight layout [co, ci, kh, kw])
    b1    : (C_in,)
    w2    : (C_out, C_in, 1, 1)
    b2    : (C_out,)
    returns: (B, C_out, H, W)
    """
    B, C_in, H, W = x_nchw.shape
    C_out = w2.shape[0]
    HW = H * W

    if batch_tile is None:
        batch_tile = _choose_batch_tile(B, C_in, C_out, HW)
    Bt = batch_tile
    assert B % Bt == 0, "batch_tile must divide the batch"
    R1, R2 = Bt * C_in, Bt * C_out

    # Activations: NCHW stays in place, only a free reshape to the 2-D slab.
    x2d = x_nchw.reshape(B * C_in, HW)

    # Boundary-validity masks for the 9 taps (padding=1), grid-invariant.
    h_idx = jnp.arange(HW, dtype=jnp.int32) // W
    w_idx = jnp.arange(HW, dtype=jnp.int32) % W
    masks = []
    for kh in range(3):
        for kw in range(3):
            dh, dw = kh - 1, kw - 1
            valid = ((h_idx + dh >= 0) & (h_idx + dh < H) &
                     (w_idx + dw >= 0) & (w_idx + dw < W))
            masks.append(valid)
    mask9 = jnp.stack(masks).astype(jnp.float32)                 # (9, HW)

    # Block-diagonal weights: kron(I_Bt, W) applies the same channel mix to
    # every image of the batch tile in a single 2-D matmul over the slab.
    eye = jnp.eye(Bt, dtype=jnp.float32)
    w1_taps = jnp.transpose(w1, (2, 3, 0, 1)).reshape(9, C_in, C_in)
    w1_bd = jnp.stack([jnp.kron(eye, w1_taps[t].astype(jnp.float32))
                       for t in range(9)])                       # (9, R1, R1)
    w2_bd = jnp.kron(eye, w2.reshape(C_out, C_in).astype(jnp.float32))  # (R2, R1)
    b1_t = jnp.tile(b1.astype(jnp.float32), Bt).reshape(R1, 1)
    b2_t = jnp.tile(b2.astype(jnp.float32), Bt).reshape(R2, 1)

    kernel = functools.partial(_seg_encode_kernel, W=W, HW=HW)

    out2d = pl.pallas_call(
        kernel,
        out_shape=jax.ShapeDtypeStruct((B * C_out, HW), x_nchw.dtype),
        grid_spec=pltpu.PrefetchScalarGridSpec(
            num_scalar_prefetch=0,
            grid=(B // Bt,),
            in_specs=[
                pl.BlockSpec((R1, HW), lambda i: (i, 0)),          # activations
                pl.BlockSpec((9, HW), lambda i: (0, 0)),           # tap masks
                pl.BlockSpec((9, R1, R1), lambda i: (0, 0, 0)),    # conv1 weights
                pl.BlockSpec((R1, 1), lambda i: (0, 0)),           # conv1 bias
                pl.BlockSpec((R2, R1), lambda i: (0, 0)),          # conv2 weights
                pl.BlockSpec((R2, 1), lambda i: (0, 0)),           # conv2 bias
            ],
            out_specs=pl.BlockSpec((R2, HW), lambda i: (i, 0)),
        ),
        compiler_params=pltpu.CompilerParams(
            dimension_semantics=("parallel",)),
    )(x2d, mask9, w1_bd, b1_t, w2_bd, b2_t)

    # Free reshape back to NCHW (row order already matches).
    return out2d.reshape(B, C_out, H, W)


def _reference(x_nchw, w1, b1, w2, b2):
    """Pure-JAX reference (lax conv) mirroring the PyTorch module."""
    dn = jax.lax.conv_dimension_numbers(x_nchw.shape, w1.shape,
                                        ("NCHW", "OIHW", "NCHW"))
    y = jax.lax.conv_general_dilated(x_nchw, w1, (1, 1), ((1, 1), (1, 1)),
                                     dimension_numbers=dn)
    y = y + b1.reshape(1, -1, 1, 1)
    y = jnp.maximum(y, 0.0)
    y = jax.lax.conv_general_dilated(y, w2, (1, 1), ((0, 0), (0, 0)),
                                     dimension_numbers=dn)
    return y + b2.reshape(1, -1, 1, 1)


if __name__ == "__main__":
    B, C_in, C_out, H, W = 2, 4, 4, 16, 16

    key = jax.random.PRNGKey(0)
    k_x, k_w1, k_b1, k_w2, k_b2 = jax.random.split(key, 5)

    x = jax.random.normal(k_x, (B, C_in, H, W), dtype=jnp.float32)
    w1 = jax.random.normal(k_w1, (C_in, C_in, 3, 3), dtype=jnp.float32) * 0.1
    b1 = jax.random.normal(k_b1, (C_in,), dtype=jnp.float32) * 0.1
    w2 = jax.random.normal(k_w2, (C_out, C_in, 1, 1), dtype=jnp.float32) * 0.1
    b2 = jax.random.normal(k_b2, (C_out,), dtype=jnp.float32) * 0.1

    out = seg_encode_v1(x, w1, b1, w2, b2)
    out = jax.block_until_ready(out)

    ref = jax.block_until_ready(_reference(x, w1, b1, w2, b2))
    assert out.shape == (B, C_out, H, W)
    assert jnp.allclose(out, ref, atol=1e-4, rtol=1e-4), "mismatch vs reference"

    print("KERNEL_OK")
</pallas_src>

<mosaic_0001>
module attributes {stable_mosaic.version = 11 : i64} {
  func.func @_seg_encode_kernel(%arg0: i32, %arg1: memref<8x256xf32, #tpu.memory_space<vmem>>, %arg2: memref<9x256xf32, #tpu.memory_space<vmem>>, %arg3: memref<9x8x8xf32, #tpu.memory_space<vmem>>, %arg4: memref<8x1xf32, #tpu.memory_space<vmem>>, %arg5: memref<8x8xf32, #tpu.memory_space<vmem>>, %arg6: memref<8x1xf32, #tpu.memory_space<vmem>>, %arg7: memref<8x256xf32, #tpu.memory_space<vmem>>) attributes {dimension_semantics = [#tpu.dimension_semantics<parallel>], iteration_bounds = array<i64: 1>, scalar_prefetch = 0 : i64, scratch_operands = 0 : i64, tpu.core_type = #tpu.core_type<tc>, window_params = [{transform_indices = @transform_0, window_bounds = array<i64: 8, 256>}, {pipeline_mode = #tpu.pipeline_mode<synchronous>, transform_indices = @transform_1, window_bounds = array<i64: 9, 256>}, {pipeline_mode = #tpu.pipeline_mode<synchronous>, transform_indices = @transform_2, window_bounds = array<i64: 9, 8, 8>}, {pipeline_mode = #tpu.pipeline_mode<synchronous>, transform_indices = @transform_3, window_bounds = array<i64: 8, 1>}, {pipeline_mode = #tpu.pipeline_mode<synchronous>, transform_indices = @transform_4, window_bounds = array<i64: 8, 8>}, {pipeline_mode = #tpu.pipeline_mode<synchronous>, transform_indices = @transform_5, window_bounds = array<i64: 8, 1>}, {transform_indices = @transform_6, window_bounds = array<i64: 8, 256>}]} {
    %c0 = arith.constant 0 : index
    %c0_0 = arith.constant 0 : index
    %0 = vector.load %arg1[%c0, %c0_0] : memref<8x256xf32, #tpu.memory_space<vmem>>, vector<8x256xf32>
    %c4 = arith.constant 4 : index
    %c0_1 = arith.constant 0 : index
    %c0_2 = arith.constant 0 : index
    %1 = vector.load %arg3[%c4, %c0_1, %c0_2] : memref<9x8x8xf32, #tpu.memory_space<vmem>>, vector<1x8x8xf32>
    %2 = vector.shape_cast %1 : vector<1x8x8xf32> to vector<8x8xf32>
    %cst = arith.constant dense<0.000000e+00> : vector<8x256xf32>
    %3 = tpu.matmul %2, %0, %cst {dimension_numbers = #tpu.dot_dimension_numbers<[1], [0], [0], [1], [0, 0, 1, 1], [], []>} : vector<8x8xf32>, vector<8x256xf32>, vector<8x256xf32> -> vector<8x256xf32>
    %c17_i32 = arith.constant 17 : i32
    %4 = tpu.dynamic_rotate %0 by %c17_i32 dim 1 : vector<8x256xf32>, i32 -> vector<8x256xf32>
    %c0_3 = arith.constant 0 : index
    %c0_4 = arith.constant 0 : index
    %5 = vector.load %arg2[%c0_3, %c0_4] : memref<9x256xf32, #tpu.memory_space<vmem>>, vector<1x256xf32>
    %c0_5 = arith.constant 0 : index
    %c0_6 = arith.constant 0 : index
    %c0_7 = arith.constant 0 : index
    %6 = vector.load %arg3[%c0_5, %c0_6, %c0_7] : memref<9x8x8xf32, #tpu.memory_space<vmem>>, vector<1x8x8xf32>
    %7 = vector.shape_cast %6 : vector<1x8x8xf32> to vector<8x8xf32>
    %8 = vector.broadcast %5 : vector<1x256xf32> to vector<8x256xf32>
    %9 = arith.mulf %4, %8 : vector<8x256xf32>
    %cst_8 = arith.constant dense<0.000000e+00> : vector<8x256xf32>
    %10 = tpu.matmul %7, %9, %cst_8 {dimension_numbers = #tpu.dot_dimension_numbers<[1], [0], [0], [1], [0, 0, 1, 1], [], []>} : vector<8x8xf32>, vector<8x256xf32>, vector<8x256xf32> -> vector<8x256xf32>
    %11 = arith.addf %3, %10 : vector<8x256xf32>
    %c16_i32 = arith.constant 16 : i32
    %12 = tpu.dynamic_rotate %0 by %c16_i32 dim 1 : vector<8x256xf32>, i32 -> vector<8x256xf32>
    %c1 = arith.constant 1 : index
    %c0_9 = arith.constant 0 : index
    %13 = vector.load %arg2[%c1, %c0_9] : memref<9x256xf32, #tpu.memory_space<vmem>>, vector<1x256xf32>
    %c1_10 = arith.constant 1 : index
    %c0_11 = arith.constant 0 : index
    %c0_12 = arith.constant 0 : index
    %14 = vector.load %arg3[%c1_10, %c0_11, %c0_12] : memref<9x8x8xf32, #tpu.memory_space<vmem>>, vector<1x8x8xf32>
    %15 = vector.shape_cast %14 : vector<1x8x8xf32> to vector<8x8xf32>
    %16 = vector.broadcast %13 : vector<1x256xf32> to vector<8x256xf32>
    %17 = arith.mulf %12, %16 : vector<8x256xf32>
    %cst_13 = arith.constant dense<0.000000e+00> : vector<8x256xf32>
    %18 = tpu.matmul %15, %17, %cst_13 {dimension_numbers = #tpu.dot_dimension_numbers<[1], [0], [0], [1], [0, 0, 1, 1], [], []>} : vector<8x8xf32>, vector<8x256xf32>, vector<8x256xf32> -> vector<8x256xf32>
    %19 = arith.addf %11, %18 : vector<8x256xf32>
    %c15_i32 = arith.constant 15 : i32
    %20 = tpu.dynamic_rotate %0 by %c15_i32 dim 1 : vector<8x256xf32>, i32 -> vector<8x256xf32>
    %c2 = arith.constant 2 : index
    %c0_14 = arith.constant 0 : index
    %21 = vector.load %arg2[%c2, %c0_14] : memref<9x256xf32, #tpu.memory_space<vmem>>, vector<1x256xf32>
    %c2_15 = arith.constant 2 : index
    %c0_16 = arith.constant 0 : index
    %c0_17 = arith.constant 0 : index
    %22 = vector.load %arg3[%c2_15, %c0_16, %c0_17] : memref<9x8x8xf32, #tpu.memory_space<vmem>>, vector<1x8x8xf32>
    %23 = vector.shape_cast %22 : vector<1x8x8xf32> to vector<8x8xf32>
    %24 = vector.broadcast %21 : vector<1x256xf32> to vector<8x256xf32>
    %25 = arith.mulf %20, %24 : vector<8x256xf32>
    %cst_18 = arith.constant dense<0.000000e+00> : vector<8x256xf32>
    %26 = tpu.matmul %23, %25, %cst_18 {dimension_numbers = #tpu.dot_dimension_numbers<[1], [0], [0], [1], [0, 0, 1, 1], [], []>} : vector<8x8xf32>, vector<8x256xf32>, vector<8x256xf32> -> vector<8x256xf32>
    %27 = arith.addf %19, %26 : vector<8x256xf32>
    %c1_i32 = arith.constant 1 : i32
    %28 = tpu.dynamic_rotate %0 by %c1_i32 dim 1 : vector<8x256xf32>, i32 -> vector<8x256xf32>
    %c3 = arith.constant 3 : index
    %c0_19 = arith.constant 0 : index
    %29 = vector.load %arg2[%c3, %c0_19] : memref<9x256xf32, #tpu.memory_space<vmem>>, vector<1x256xf32>
    %c3_20 = arith.constant 3 : index
    %c0_21 = arith.constant 0 : index
    %c0_22 = arith.constant 0 : index
    %30 = vector.load %arg3[%c3_20, %c0_21, %c0_22] : memref<9x8x8xf32, #tpu.memory_space<vmem>>, vector<1x8x8xf32>
    %31 = vector.shape_cast %30 : vector<1x8x8xf32> to vector<8x8xf32>
    %32 = vector.broadcast %29 : vector<1x256xf32> to vector<8x256xf32>
    %33 = arith.mulf %28, %32 : vector<8x256xf32>
    %cst_23 = arith.constant dense<0.000000e+00> : vector<8x256xf32>
    %34 = tpu.matmul %31, %33, %cst_23 {dimension_numbers = #tpu.dot_dimension_numbers<[1], [0], [0], [1], [0, 0, 1, 1], [], []>} : vector<8x8xf32>, vector<8x256xf32>, vector<8x256xf32> -> vector<8x256xf32>
    %35 = arith.addf %27, %34 : vector<8x256xf32>
    %c255_i32 = arith.constant 255 : i32
    %36 = tpu.dynamic_rotate %0 by %c255_i32 dim 1 : vector<8x256xf32>, i32 -> vector<8x256xf32>
    %c5 = arith.constant 5 : index
    %c0_24 = arith.constant 0 : index
    %37 = vector.load %arg2[%c5, %c0_24] : memref<9x256xf32, #tpu.memory_space<vmem>>, vector<1x256xf32>
    %c5_25 = arith.constant 5 : index
    %c0_26 = arith.constant 0 : index
    %c0_27 = arith.constant 0 : index
    %38 = vector.load %arg3[%c5_25, %c0_26, %c0_27] : memref<9x8x8xf32, #tpu.memory_space<vmem>>, vector<1x8x8xf32>
    %39 = vector.shape_cast %38 : vector<1x8x8xf32> to vector<8x8xf32>
    %40 = vector.broadcast %37 : vector<1x256xf32> to vector<8x256xf32>
    %41 = arith.mulf %36, %40 : vector<8x256xf32>
    %cst_28 = arith.constant dense<0.000000e+00> : vector<8x256xf32>
    %42 = tpu.matmul %39, %41, %cst_28 {dimension_numbers = #tpu.dot_dimension_numbers<[1], [0], [0], [1], [0, 0, 1, 1], [], []>} : vector<8x8xf32>, vector<8x256xf32>, vector<8x256xf32> -> vector<8x256xf32>
    %43 = arith.addf %35, %42 : vector<8x256xf32>
    %c241_i32 = arith.constant 241 : i32
    %44 = tpu.dynamic_rotate %0 by %c241_i32 dim 1 : vector<8x256xf32>, i32 -> vector<8x256xf32>
    %c6 = arith.constant 6 : index
    %c0_29 = arith.constant 0 : index
    %45 = vector.load %arg2[%c6, %c0_29] : memref<9x256xf32, #tpu.memory_space<vmem>>, vector<1x256xf32>
    %c6_30 = arith.constant 6 : index
    %c0_31 = arith.constant 0 : index
    %c0_32 = arith.constant 0 : index
    %46 = vector.load %arg3[%c6_30, %c0_31, %c0_32] : memref<9x8x8xf32, #tpu.memory_space<vmem>>, vector<1x8x8xf32>
    %47 = vector.shape_cast %46 : vector<1x8x8xf32> to vector<8x8xf32>
    %48 = vector.broadcast %45 : vector<1x256xf32> to vector<8x256xf32>
    %49 = arith.mulf %44, %48 : vector<8x256xf32>
    %cst_33 = arith.constant dense<0.000000e+00> : vector<8x256xf32>
    %50 = tpu.matmul %47, %49, %cst_33 {dimension_numbers = #tpu.dot_dimension_numbers<[1], [0], [0], [1], [0, 0, 1, 1], [], []>} : vector<8x8xf32>, vector<8x256xf32>, vector<8x256xf32> -> vector<8x256xf32>
    %51 = arith.addf %43, %50 : vector<8x256xf32>
    %c240_i32 = arith.constant 240 : i32
    %52 = tpu.dynamic_rotate %0 by %c240_i32 dim 1 : vector<8x256xf32>, i32 -> vector<8x256xf32>
    %c7 = arith.constant 7 : index
    %c0_34 = arith.constant 0 : index
    %53 = vector.load %arg2[%c7, %c0_34] : memref<9x256xf32, #tpu.memory_space<vmem>>, vector<1x256xf32>
    %c7_35 = arith.constant 7 : index
    %c0_36 = arith.constant 0 : index
    %c0_37 = arith.constant 0 : index
    %54 = vector.load %arg3[%c7_35, %c0_36, %c0_37] : memref<9x8x8xf32, #tpu.memory_space<vmem>>, vector<1x8x8xf32>
    %55 = vector.shape_cast %54 : vector<1x8x8xf32> to vector<8x8xf32>
    %56 = vector.broadcast %53 : vector<1x256xf32> to vector<8x256xf32>
    %57 = arith.mulf %52, %56 : vector<8x256xf32>
    %cst_38 = arith.constant dense<0.000000e+00> : vector<8x256xf32>
    %58 = tpu.matmul %55, %57, %cst_38 {dimension_numbers = #tpu.dot_dimension_numbers<[1], [0], [0], [1], [0, 0, 1, 1], [], []>} : vector<8x8xf32>, vector<8x256xf32>, vector<8x256xf32> -> vector<8x256xf32>
    %59 = arith.addf %51, %58 : vector<8x256xf32>
    %c239_i32 = arith.constant 239 : i32
    %60 = tpu.dynamic_rotate %0 by %c239_i32 dim 1 : vector<8x256xf32>, i32 -> vector<8x256xf32>
    %c8 = arith.constant 8 : index
    %c0_39 = arith.constant 0 : index
    %61 = vector.load %arg2[%c8, %c0_39] : memref<9x256xf32, #tpu.memory_space<vmem>>, vector<1x256xf32>
    %c8_40 = arith.constant 8 : index
    %c0_41 = arith.constant 0 : index
    %c0_42 = arith.constant 0 : index
    %62 = vector.load %arg3[%c8_40, %c0_41, %c0_42] : memref<9x8x8xf32, #tpu.memory_space<vmem>>, vector<1x8x8xf32>
    %63 = vector.shape_cast %62 : vector<1x8x8xf32> to vector<8x8xf32>
    %64 = vector.broadcast %61 : vector<1x256xf32> to vector<8x256xf32>
    %65 = arith.mulf %60, %64 : vector<8x256xf32>
    %cst_43 = arith.constant dense<0.000000e+00> : vector<8x256xf32>
    %66 = tpu.matmul %63, %65, %cst_43 {dimension_numbers = #tpu.dot_dimension_numbers<[1], [0], [0], [1], [0, 0, 1, 1], [], []>} : vector<8x8xf32>, vector<8x256xf32>, vector<8x256xf32> -> vector<8x256xf32>
    %67 = arith.addf %59, %66 : vector<8x256xf32>
    %c0_44 = arith.constant 0 : index
    %c0_45 = arith.constant 0 : index
    %68 = vector.load %arg4[%c0_44, %c0_45] : memref<8x1xf32, #tpu.memory_space<vmem>>, vector<8x1xf32>
    %69 = vector.broadcast %68 : vector<8x1xf32> to vector<8x256xf32>
    %70 = arith.addf %67, %69 : vector<8x256xf32>
    %cst_46 = arith.constant 0.000000e+00 : f32
    %71 = vector.broadcast %cst_46 : f32 to vector<8x256xf32>
    %72 = arith.maximumf %70, %71 : vector<8x256xf32>
    %c0_47 = arith.constant 0 : index
    %c0_48 = arith.constant 0 : index
    %73 = vector.load %arg5[%c0_47, %c0_48] : memref<8x8xf32, #tpu.memory_space<vmem>>, vector<8x8xf32>
    %cst_49 = arith.constant dense<0.000000e+00> : vector<8x256xf32>
    %74 = tpu.matmul %73, %72, %cst_49 {dimension_numbers = #tpu.dot_dimension_numbers<[1], [0], [0], [1], [0, 0, 1, 1], [], []>} : vector<8x8xf32>, vector<8x256xf32>, vector<8x256xf32> -> vector<8x256xf32>
    %c0_50 = arith.constant 0 : index
    %c0_51 = arith.constant 0 : index
    %75 = vector.load %arg6[%c0_50, %c0_51] : memref<8x1xf32, #tpu.memory_space<vmem>>, vector<8x1xf32>
    %76 = vector.broadcast %75 : vector<8x1xf32> to vector<8x256xf32>
    %77 = arith.addf %74, %76 : vector<8x256xf32>
    %c0_52 = arith.constant 0 : index
    %c0_53 = arith.constant 0 : index
    %78 = vector.load %arg7[%c0_52, %c0_53] : memref<8x256xf32, #tpu.memory_space<vmem>>, vector<8x256xf32>
    tpu.vector_store %arg7[%c0_52, %c0_53], %77 {strides = array<i32>} : memref<8x256xf32, #tpu.memory_space<vmem>>, vector<8x256xf32>,
    return
  }
  func.func @transform_0(%arg0: i32) -> (i32, i32) {
    %c0_i32 = arith.constant 0 : i32
    %c0_i32_0 = arith.constant 0 : i32
    return %arg0, %c0_i32 : i32, i32
  }
  func.func @transform_1(%arg0: i32) -> (i32, i32) {
    %c0_i32 = arith.constant 0 : i32
    %c0_i32_0 = arith.constant 0 : i32
    %c0_i32_1 = arith.constant 0 : i32
    return %c0_i32, %c0_i32_0 : i32, i32
  }
  func.func @transform_2(%arg0: i32) -> (i32, i32, i32) {
    %c0_i32 = arith.constant 0 : i32
    %c0_i32_0 = arith.constant 0 : i32
    %c0_i32_1 = arith.constant 0 : i32
    %c0_i32_2 = arith.constant 0 : i32
    return %c0_i32, %c0_i32_0, %c0_i32_1 : i32, i32, i32
  }
  func.func @transform_3(%arg0: i32) -> (i32, i32) {
    %c0_i32 = arith.constant 0 : i32
    %c0_i32_0 = arith.constant 0 : i32
    %c0_i32_1 = arith.constant 0 : i32
    return %c0_i32, %c0_i32_0 : i32, i32
  }
  func.func @transform_4(%arg0: i32) -> (i32, i32) {
    %c0_i32 = arith.constant 0 : i32
    %c0_i32_0 = arith.constant 0 : i32
    %c0_i32_1 = arith.constant 0 : i32
    return %c0_i32, %c0_i32_0 : i32, i32
  }
  func.func @transform_5(%arg0: i32) -> (i32, i32) {
    %c0_i32 = arith.constant 0 : i32
    %c0_i32_0 = arith.constant 0 : i32
    %c0_i32_1 = arith.constant 0 : i32
    return %c0_i32, %c0_i32_0 : i32, i32
  }
  func.func @transform_6(%arg0: i32) -> (i32, i32) {
    %c0_i32 = arith.constant 0 : i32
    %c0_i32_0 = arith.constant 0 : i32
    return %arg0, %c0_i32 : i32, i32
  }
}

</mosaic_0001>

<llo_original>
// kernel: tpu_custom_call.1
$region0: #{tpu_custom_call.1}
  #allocation0 [shape = 'u32[]', space=smem, size = 0x4, offset = 0x4, fixed_abs, tag = 'smem constant byte address 0x4 - core index']
  #allocation1 [shape = 'u32[144,128]{1,0:T(1,128)}', space=vmem, size = 0x12000, scoped, tag = 'internal scratch']
  %s0 = inlined_call_operand.vmem [shape: f32[8,256], index: 0, kind: input, shape index: {}]
  %s1 = inlined_call_operand.vmem [shape: f32[9,256], index: 1, kind: input, shape index: {}]
  %s2 = inlined_call_operand.vmem [shape: f32[9,8,8], index: 2, kind: input, shape index: {}]
  %s3 = inlined_call_operand.vmem [shape: f32[8,1], index: 3, kind: input, shape index: {}]
  %s4 = inlined_call_operand.vmem [shape: f32[8,8], index: 4, kind: input, shape index: {}]
  %s5 = inlined_call_operand.vmem [shape: f32[8,1], index: 5, kind: input, shape index: {}]
  %s6 = inlined_call_operand.hbm [shape: f32[8,256], index: 6, kind: output, shape index: {}]
  %s7 = sld [smem:[#allocation0]]
  $region34: #{tpu_custom_call.1} parent=0
    _
  %s9 = ssub.s32 1, %s7
  %s10 = scalar_select 0, %s9, %s7
  $region1: #{tpu_custom_call.1} parent=0
    #allocation2 [shape = 'u8[8192]{0}', space=vmem, size = 0x2000, scoped, tag = 'output window, operand 0, single buffered']
    #allocation3 [shape = 's32[1]{0}', space=sflag, size = 0x4, scoped, tag = 'scoped memory for tpu_custom_call.1']
    %11 = vsyncpa [#allocation3], 0
    // Predicated region
    $region2: #{tpu_custom_call.1} parent=1 // pred_check
      _
    $region3: #{tpu_custom_call.1} parent=1 // pred_check_branch
      %13 = sbr.rel (0) target = $region5
    $region4: #{tpu_custom_call.1} parent=1 // pred_region
      _
    $region5: #{tpu_custom_call.1} parent=1 // pred_fallthru
      _
    // Predicated region
    $region6: #{tpu_custom_call.1} parent=1 // pred_check
      _
    $region7: #{tpu_custom_call.1} parent=1 // pred_check_branch
      %15 = sbr.rel (0) target = $region9
    $region8: #{tpu_custom_call.1} parent=1 // pred_region
      _
    $region9: #{tpu_custom_call.1} parent=1 // pred_fallthru
      _
    // Predicated region
    $region10: #{tpu_custom_call.1} parent=1 // pred_check
      _
    $region11: #{tpu_custom_call.1} parent=1 // pred_check_branch
      %17 = sbr.rel (0) target = $region13
    $region12: #{tpu_custom_call.1} parent=1 // pred_region
      _
    $region13: #{tpu_custom_call.1} parent=1 // pred_fallthru
      _
    // Predicated region
    $region14: #{tpu_custom_call.1} parent=1 // pred_check
      _
    $region15: #{tpu_custom_call.1} parent=1 // pred_check_branch
      %19 = sbr.rel (0) target = $region17
    $region16: #{tpu_custom_call.1} parent=1 // pred_region
      _
    $region17: #{tpu_custom_call.1} parent=1 // pred_fallthru
      _
    // Predicated region
    $region18: #{tpu_custom_call.1} parent=1 // pred_check
      _
    $region19: #{tpu_custom_call.1} parent=1 // pred_check_branch
      %21 = sbr.rel (0) target = $region21
    $region20: #{tpu_custom_call.1} parent=1 // pred_region
      _
    $region21: #{tpu_custom_call.1} parent=1 // pred_fallthru
      _
    // Predicated region
    $region22: #{tpu_custom_call.1} parent=1 // pred_check
      _
    $region23: #{tpu_custom_call.1} parent=1 // pred_check_branch
      %23 = sbr.rel (0) target = $region25
    $region24: #{tpu_custom_call.1} parent=1 // pred_region
      _
    $region25: #{tpu_custom_call.1} parent=1 // pred_fallthru
      _
    %v24 = vld [vmem:[%s0] sm:$0xff]
    %v25 = vld [vmem:[%s0 + $0x8] sm:$0xff]
    %s26 = scalar_lea.vmem %s2, 32
    %v27 = vld [vmem:[%s26] sm:$0xff]
    %28 = vrot.lane.b32.xlu0 %v24, 17
    %v29 = vpop.permute.xlu0 %28
    %30 = vrot.lane.b32.xlu0 %v25, 17
    %v31 = vpop.permute.xlu0 %30
    %v32 = vlaneseq
    %v33 = vand.u32 %v32, 127
    %vm34 = vcmp.lt.s32.totalorder %v33, 17
    %v35 = vsel %vm34, %v29, %v31
    %v36 = vsel %vm34, %v31, %v29
    %v37 = vld [vmem:[%s1] ss:$8 sm:$0x3]
    %v38 = vld [vmem:[%s2] sm:$0xff]
    %v40 = vlaneseq
    %v41 = vshrl.u32 %v40, 7
    %v42 = vsub.s32 0, %v41
    %v43 = vrot.slane %v37, %v42
    %v44 = vlaneseq
    %v45 = vshrl.u32 %v44, 7
    %v46 = vsub.s32 1, %v45
    %v47 = vrot.slane %v37, %v46
    %v50 = vmul.f32 %v36, %v43
    %v51 = vmul.f32 %v35, %v47
    %vm52 = vcmask 64512
    %v54 = vsel %vm52, %v38, 0
    %56 = vmatprep.subr.mxu0 %v51
    %57 = vmatpush1.msra.mxu0 %v50
    %58 = vmatprep.subr.mxu0 0.0
    %59 = vmatpush1.msra.mxu0 0.0
    %60 = vmatprep.subr.mxu0 0.0
    %61 = vmatpush1.msra.mxu0 0.0
    %62 = vmatprep.subr.mxu0 0.0
    %63 = vmatpush1.msra.mxu0 0.0
    %64 = vmatprep.subr.mxu0 0.0
    %65 = vmatpush1.msra.mxu0 0.0
    %66 = vmatprep.subr.mxu0 0.0
    %67 = vmatpush1.msra.mxu0 0.0
    %68 = vmatprep.subr.mxu0 0.0
    %69 = vmatpush1.msra.mxu0 0.0
    %70 = vmatprep.subr.mxu0 0.0
    %71 = vmatpush1.msra.mxu0 0.0
    %72 = vmatprep.subr.mxu0 0.0
    %73 = vmatpush1.msra.mxu0 0.0
    %74 = vmatprep.subr.mxu0 0.0
    %75 = vmatpush1.msra.mxu0 0.0
    %76 = vmatprep.subr.mxu0 0.0
    %77 = vmatpush1.msra.mxu0 0.0
    %78 = vmatprep.subr.mxu0 0.0
    %79 = vmatpush1.msra.mxu0 0.0
    %80 = vmatprep.subr.mxu0 0.0
    %81 = vmatpush1.msra.mxu0 0.0
    %82 = vmatprep.subr.mxu0 0.0
    %83 = vmatpush1.msra.mxu0 0.0
    %84 = vmatprep.subr.mxu0 0.0
    %85 = vmatpush1.msra.mxu0 0.0
    %86 = vmatprep.subr.mxu0 0.0
    %87 = vmatpush1.msra.mxu0 0.0
    %88 = vmatprep.subr.mxu0 0.0
    %89 = vmatpush1.msra.mxu0 0.0
    %90 = vmatprep.subr.mxu0 0.0
    %91 = vmatpush1.msra.mxu0 0.0
    %92 = vmatprep.subr.mxu0 0.0
    %93 = vmatpush1.msra.mxu0 0.0
    %94 = vmatprep.subr.mxu0 0.0
    %95 = vmatpush1.msra.mxu0 0.0
    %96 = vmatprep.subr.mxu0 0.0
    %97 = vmatpush1.msra.mxu0 0.0
    %98 = vmatprep.subr.mxu0 0.0
    %99 = vmatpush1.msra.mxu0 0.0
    %100 = vmatprep.subr.mxu0 0.0
    %101 = vmatpush1.msra.mxu0 0.0
    %102 = vmatprep.subr.mxu0 0.0
    %103 = vmatpush1.msra.mxu0 0.0
    %104 = vmatprep.subr.mxu0 0.0
    %105 = vmatpush1.msra.mxu0 0.0
    %106 = vmatprep.subr.mxu0 0.0
    %107 = vmatpush1.msra.mxu0 0.0
    %108 = vmatprep.subr.mxu0 0.0
    %109 = vmatpush1.msra.mxu0 0.0
    %110 = vmatprep.subr.mxu0 0.0
    %111 = vmatpush1.msra.mxu0 0.0
    %112 = vmatprep.subr.mxu0 0.0
    %113 = vmatpush1.msra.mxu0 0.0
    %114 = vmatprep.subr.mxu0 0.0
    %115 = vmatpush1.msra.mxu0 0.0
    %116 = vmatprep.subr.mxu0 0.0
    %117 = vmatpush1.msra.mxu0 0.0
    %118 = vmatprep.subr.mxu0 0.0
    %119 = vmatpush1.msra.mxu0 0.0
    %120 = vmatprep.mubr.f32.mxu0 0.0
    %121 = vmatmul.mubr.f32.gmra.mrb[0].mxu0 %v54
    %v122 = vpop.f32.mrb[0].mxu0
    %v123 = vadd.f32 0.0, %v122
    %v124 = vpop.f32.mrb[0].mxu0
    %v125 = vadd.f32 0.0, %v124
    %126 = vdwg.mxu0
    %v128 = vsel %vm52, %v27, 0
    %130 = vmatprep.subr.mxu0 %v25
    %131 = vmatpush1.msra.mxu0 %v24
    %132 = vmatprep.subr.mxu0 0.0
    %133 = vmatpush1.msra.mxu0 0.0
    %134 = vmatprep.subr.mxu0 0.0
    %135 = vmatpush1.msra.mxu0 0.0
    %136 = vmatprep.subr.mxu0 0.0
    %137 = vmatpush1.msra.mxu0 0.0
    %138 = vmatprep.subr.mxu0 0.0
    %139 = vmatpush1.msra.mxu0 0.0
    %140 = vmatprep.subr.mxu0 0.0
    %141 = vmatpush1.msra.mxu0 0.0
    %142 = vmatprep.subr.mxu0 0.0
    %143 = vmatpush1.msra.mxu0 0.0
    %144 = vmatprep.subr.mxu0 0.0
    %145 = vmatpush1.msra.mxu0 0.0
    %146 = vmatprep.subr.mxu0 0.0
    %147 = vmatpush1.msra.mxu0 0.0
    %148 = vmatprep.subr.mxu0 0.0
    %149 = vmatpush1.msra.mxu0 0.0
    %150 = vmatprep.subr.mxu0 0.0
    %151 = vmatpush1.msra.mxu0 0.0
    %152 = vmatprep.subr.mxu0 0.0
    %153 = vmatpush1.msra.mxu0 0.0
    %154 = vmatprep.subr.mxu0 0.0
    %155 = vmatpush1.msra.mxu0 0.0
    %156 = vmatprep.subr.mxu0 0.0
    %157 = vmatpush1.msra.mxu0 0.0
    %158 = vmatprep.subr.mxu0 0.0
    %159 = vmatpush1.msra.mxu0 0.0
    %160 = vmatprep.subr.mxu0 0.0
    %161 = vmatpush1.msra.mxu0 0.0
    %162 = vmatprep.subr.mxu0 0.0
    %163 = vmatpush1.msra.mxu0 0.0
    %164 = vmatprep.subr.mxu0 0.0
    %165 = vmatpush1.msra.mxu0 0.0
    %166 = vmatprep.subr.mxu0 0.0
    %167 = vmatpush1.msra.mxu0 0.0
    %168 = vmatprep.subr.mxu0 0.0
    %169 = vmatpush1.msra.mxu0 0.0
    %170 = vmatprep.subr.mxu0 0.0
    %171 = vmatpush1.msra.mxu0 0.0
    %172 = vmatprep.subr.mxu0 0.0
    %173 = vmatpush1.msra.mxu0 0.0
    %174 = vmatprep.subr.mxu0 0.0
    %175 = vmatpush1.msra.mxu0 0.0
    %176 = vmatprep.subr.mxu0 0.0
    %177 = vmatpush1.msra.mxu0 0.0
    %178 = vmatprep.subr.mxu0 0.0
    %179 = vmatpush1.msra.mxu0 0.0
    %180 = vmatprep.subr.mxu0 0.0
    %181 = vmatpush1.msra.mxu0 0.0
    %182 = vmatprep.subr.mxu0 0.0
    %183 = vmatpush1.msra.mxu0 0.0
    %184 = vmatprep.subr.mxu0 0.0
    %185 = vmatpush1.msra.mxu0 0.0
    %186 = vmatprep.subr.mxu0 0.0
    %187 = vmatpush1.msra.mxu0 0.0
    %188 = vmatprep.subr.mxu0 0.0
    %189 = vmatpush1.msra.mxu0 0.0
    %190 = vmatprep.subr.mxu0 0.0
    %191 = vmatpush1.msra.mxu0 0.0
    %192 = vmatprep.subr.mxu0 0.0
    %193 = vmatpush1.msra.mxu0 0.0
    %194 = vmatprep.mubr.f32.mxu0 0.0
    %195 = vmatmul.mubr.f32.gmra.mrb[0].mxu0 %v128
    %v196 = vpop.f32.mrb[0].mxu0
    %v197 = vadd.f32 %v123, %v196
    %v198 = vpop.f32.mrb[0].mxu0
    %v199 = vadd.f32 %v125, %v198
    %200 = vdwg.mxu0
    %201 = vrot.lane.b32.xlu0 %v24, 16
    %v202 = vpop.permute.xlu0 %201
    %203 = vrot.lane.b32.xlu0 %v25, 16
    %v204 = vpop.permute.xlu0 %203
    %vm205 = vcmp.lt.s32.totalorder %v33, 16
    %v206 = vsel %vm205, %v202, %v204
    %v207 = vsel %vm205, %v204, %v202
    %s208 = scalar_lea.vmem %s1, 1
    %v209 = vld [vmem:[%s208] ss:$8 sm:$0x3]
    %s210 = scalar_lea.vmem %s2, 8
    %v211 = vld [vmem:[%s210] sm:$0xff]
    %v213 = vlaneseq
    %v214 = vshrl.u32 %v213, 7
    %v215 = vsub.s32 0, %v214
    %v216 = vrot.slane %v209, %v215
    %v217 = vlaneseq
    %v218 = vshrl.u32 %v217, 7
    %v219 = vsub.s32 1, %v218
    %v220 = vrot.slane %v209, %v219
    %v223 = vmul.f32 %v207, %v216
    %v224 = vmul.f32 %v206, %v220
    %v226 = vsel %vm52, %v211, 0
    %228 = vmatprep.subr.mxu0 %v224
    %229 = vmatpush1.msra.mxu0 %v223
    %230 = vmatprep.subr.mxu0 0.0
    %231 = vmatpush1.msra.mxu0 0.0
    %232 = vmatprep.subr.mxu0 0.0
    %233 = vmatpush1.msra.mxu0 0.0
    %234 = vmatprep.subr.mxu0 0.0
    %235 = vmatpush1.msra.mxu0 0.0
    %236 = vmatprep.subr.mxu0 0.0
    %237 = vmatpush1.msra.mxu0 0.0
    %238 = vmatprep.subr.mxu0 0.0
    %239 = vmatpush1.msra.mxu0 0.0
    %240 = vmatprep.subr.mxu0 0.0
    %241 = vmatpush1.msra.mxu0 0.0
    %242 = vmatprep.subr.mxu0 0.0
    %243 = vmatpush1.msra.mxu0 0.0
    %244 = vmatprep.subr.mxu0 0.0
    %245 = vmatpush1.msra.mxu0 0.0
    %246 = vmatprep.subr.mxu0 0.0
    %247 = vmatpush1.msra.mxu0 0.0
    %248 = vmatprep.subr.mxu0 0.0
    %249 = vmatpush1.msra.mxu0 0.0
    %250 = vmatprep.subr.mxu0 0.0
    %251 = vmatpush1.msra.mxu0 0.0
    %252 = vmatprep.subr.mxu0 0.0
    %253 = vmatpush1.msra.mxu0 0.0
    %254 = vmatprep.subr.mxu0 0.0
    %255 = vmatpush1.msra.mxu0 0.0
    %256 = vmatprep.subr.mxu0 0.0
    %257 = vmatpush1.msra.mxu0 0.0
    %258 = vmatprep.subr.mxu0 0.0
    %259 = vmatpush1.msra.mxu0 0.0
    %260 = vmatprep.subr.mxu0 0.0
    %261 = vmatpush1.msra.mxu0 0.0
    %262 = vmatprep.subr.mxu0 0.0
    %263 = vmatpush1.msra.mxu0 0.0
    %264 = vmatprep.subr.mxu0 0.0
    %265 = vmatpush1.msra.mxu0 0.0
    %266 = vmatprep.subr.mxu0 0.0
    %267 = vmatpush1.msra.mxu0 0.0
    %268 = vmatprep.subr.mxu0 0.0
    %269 = vmatpush1.msra.mxu0 0.0
    %270 = vmatprep.subr.mxu0 0.0
    %271 = vmatpush1.msra.mxu0 0.0
    %272 = vmatprep.subr.mxu0 0.0
    %273 = vmatpush1.msra.mxu0 0.0
    %274 = vmatprep.subr.mxu0 0.0
    %275 = vmatpush1.msra.mxu0 0.0
    %276 = vmatprep.subr.mxu0 0.0
    %277 = vmatpush1.msra.mxu0 0.0
    %278 = vmatprep.subr.mxu0 0.0
    %279 = vmatpush1.msra.mxu0 0.0
    %280 = vmatprep.subr.mxu0 0.0
    %281 = vmatpush1.msra.mxu0 0.0
    %282 = vmatprep.subr.mxu0 0.0
    %283 = vmatpush1.msra.mxu0 0.0
    %284 = vmatprep.subr.mxu0 0.0
    %285 = vmatpush1.msra.mxu0 0.0
    %286 = vmatprep.subr.mxu0 0.0
    %287 = vmatpush1.msra.mxu0 0.0
    %288 = vmatprep.subr.mxu0 0.0
    %289 = vmatpush1.msra.mxu0 0.0
    %290 = vmatprep.subr.mxu0 0.0
    %291 = vmatpush1.msra.mxu0 0.0
    %292 = vmatprep.mubr.f32.mxu0 0.0
    %293 = vmatmul.mubr.f32.gmra.mrb[0].mxu0 %v226
    %v294 = vpop.f32.mrb[0].mxu0
    %v295 = vadd.f32 0.0, %v294
    %v296 = vpop.f32.mrb[0].mxu0
    %v297 = vadd.f32 0.0, %v296
    %298 = vdwg.mxu0
    %v299 = vadd.f32 %v197, %v295
    %v300 = vadd.f32 %v199, %v297
    %301 = vrot.lane.b32.xlu0 %v24, 15
    %v302 = vpop.permute.xlu0 %301
    %303 = vrot.lane.b32.xlu0 %v25, 15
    %v304 = vpop.permute.xlu0 %303
    %vm305 = vcmp.lt.s32.totalorder %v33, 15
    %v306 = vsel %vm305, %v302, %v304
    %v307 = vsel %vm305, %v304, %v302
    %s308 = scalar_lea.vmem %s1, 2
    %v309 = vld [vmem:[%s308] ss:$8 sm:$0x3]
    %s310 = scalar_lea.vmem %s2, 16
    %v311 = vld [vmem:[%s310] sm:$0xff]
    %v313 = vlaneseq
    %v314 = vshrl.u32 %v313, 7
    %v315 = vsub.s32 0, %v314
    %v316 = vrot.slane %v309, %v315
    %v317 = vlaneseq
    %v318 = vshrl.u32 %v317, 7
    %v319 = vsub.s32 1, %v318
    %v320 = vrot.slane %v309, %v319
    %v323 = vmul.f32 %v307, %v316
    %v324 = vmul.f32 %v306, %v320
    %v326 = vsel %vm52, %v311, 0
    %328 = vmatprep.subr.mxu0 %v324
    %329 = vmatpush1.msra.mxu0 %v323
    %330 = vmatprep.subr.mxu0 0.0
    %331 = vmatpush1.msra.mxu0 0.0
    %332 = vmatprep.subr.mxu0 0.0
    %333 = vmatpush1.msra.mxu0 0.0
    %334 = vmatprep.subr.mxu0 0.0
    %335 = vmatpush1.msra.mxu0 0.0
    %336 = vmatprep.subr.mxu0 0.0
    %337 = vmatpush1.msra.mxu0 0.0
    %338 = vmatprep.subr.mxu0 0.0
    %339 = vmatpush1.msra.mxu0 0.0
    %340 = vmatprep.subr.mxu0 0.0
    %341 = vmatpush1.msra.mxu0 0.0
    %342 = vmatprep.subr.mxu0 0.0
    %343 = vmatpush1.msra.mxu0 0.0
    %344 = vmatprep.subr.mxu0 0.0
    %345 = vmatpush1.msra.mxu0 0.0
    %346 = vmatprep.subr.mxu0 0.0
    %347 = vmatpush1.msra.mxu0 0.0
    %348 = vmatprep.subr.mxu0 0.0
    %349 = vmatpush1.msra.mxu0 0.0
    %350 = vmatprep.subr.mxu0 0.0
    %351 = vmatpush1.msra.mxu0 0.0
    %352 = vmatprep.subr.mxu0 0.0
    %353 = vmatpush1.msra.mxu0 0.0
    %354 = vmatprep.subr.mxu0 0.0
    %355 = vmatpush1.msra.mxu0 0.0
    %356 = vmatprep.subr.mxu0 0.0
    %357 = vmatpush1.msra.mxu0 0.0
    %358 = vmatprep.subr.mxu0 0.0
    %359 = vmatpush1.msra.mxu0 0.0
    %360 = vmatprep.subr.mxu0 0.0
    %361 = vmatpush1.msra.mxu0 0.0
    %362 = vmatprep.subr.mxu0 0.0
    %363 = vmatpush1.msra.mxu0 0.0
    %364 = vmatprep.subr.mxu0 0.0
    %365 = vmatpush1.msra.mxu0 0.0
    %366 = vmatprep.subr.mxu0 0.0
    %367 = vmatpush1.msra.mxu0 0.0
    %368 = vmatprep.subr.mxu0 0.0
    %369 = vmatpush1.msra.mxu0 0.0
    %370 = vmatprep.subr.mxu0 0.0
    %371 = vmatpush1.msra.mxu0 0.0
    %372 = vmatprep.subr.mxu0 0.0
    %373 = vmatpush1.msra.mxu0 0.0
    %374 = vmatprep.subr.mxu0 0.0
    %375 = vmatpush1.msra.mxu0 0.0
    %376 = vmatprep.subr.mxu0 0.0
    %377 = vmatpush1.msra.mxu0 0.0
    %378 = vmatprep.subr.mxu0 0.0
    %379 = vmatpush1.msra.mxu0 0.0
    %380 = vmatprep.subr.mxu0 0.0
    %381 = vmatpush1.msra.mxu0 0.0
    %382 = vmatprep.subr.mxu0 0.0
    %383 = vmatpush1.msra.mxu0 0.0
    %384 = vmatprep.subr.mxu0 0.0
    %385 = vmatpush1.msra.mxu0 0.0
    %386 = vmatprep.subr.mxu0 0.0
    %387 = vmatpush1.msra.mxu0 0.0
    %388 = vmatprep.subr.mxu0 0.0
    %389 = vmatpush1.msra.mxu0 0.0
    %390 = vmatprep.subr.mxu0 0.0
    %391 = vmatpush1.msra.mxu0 0.0
    %392 = vmatprep.mubr.f32.mxu0 0.0
    %393 = vmatmul.mubr.f32.gmra.mrb[0].mxu0 %v326
    %v394 = vpop.f32.mrb[0].mxu0
    %v395 = vadd.f32 0.0, %v394
    %v396 = vpop.f32.mrb[0].mxu0
    %v397 = vadd.f32 0.0, %v396
    %398 = vdwg.mxu0
    %v399 = vadd.f32 %v299, %v395
    %v400 = vadd.f32 %v300, %v397
    %401 = vrot.lane.b32.xlu0 %v24, 1
    %v402 = vpop.permute.xlu0 %401
    %403 = vrot.lane.b32.xlu0 %v25, 1
    %v404 = vpop.permute.xlu0 %403
    %vm405 = vcmp.lt.s32.totalorder %v33, 1
    %v406 = vsel %vm405, %v402, %v404
    %v407 = vsel %vm405, %v404, %v402
    %s408 = scalar_lea.vmem %s1, 3
    %v409 = vld [vmem:[%s408] ss:$8 sm:$0x3]
    %s410 = scalar_lea.vmem %s2, 24
    %v411 = vld [vmem:[%s410] sm:$0xff]
    %v413 = vlaneseq
    %v414 = vshrl.u32 %v413, 7
    %v415 = vsub.s32 0, %v414
    %v416 = vrot.slane %v409, %v415
    %v417 = vlaneseq
    %v418 = vshrl.u32 %v417, 7
    %v419 = vsub.s32 1, %v418
    %v420 = vrot.slane %v409, %v419
    %v423 = vmul.f32 %v407, %v416
    %v424 = vmul.f32 %v406, %v420
    %v426 = vsel %vm52, %v411, 0
    %428 = vmatprep.subr.mxu0 %v424
    %429 = vmatpush1.msra.mxu0 %v423
    %430 = vmatprep.subr.mxu0 0.0
    %431 = vmatpush1.msra.mxu0 0.0
    %432 = vmatprep.subr.mxu0 0.0
    %433 = vmatpush1.msra.mxu0 0.0
    %434 = vmatprep.subr.mxu0 0.0
    %435 = vmatpush1.msra.mxu0 0.0
    %436 = vmatprep.subr.mxu0 0.0
    %437 = vmatpush1.msra.mxu0 0.0
    %438 = vmatprep.subr.mxu0 0.0
    %439 = vmatpush1.msra.mxu0 0.0
    %440 = vmatprep.subr.mxu0 0.0
    %441 = vmatpush1.msra.mxu0 0.0
    %442 = vmatprep.subr.mxu0 0.0
    %443 = vmatpush1.msra.mxu0 0.0
    %444 = vmatprep.subr.mxu0 0.0
    %445 = vmatpush1.msra.mxu0 0.0
    %446 = vmatprep.subr.mxu0 0.0
    %447 = vmatpush1.msra.mxu0 0.0
    %448 = vmatprep.subr.mxu0 0.0
    %449 = vmatpush1.msra.mxu0 0.0
    %450 = vmatprep.subr.mxu0 0.0
    %451 = vmatpush1.msra.mxu0 0.0
    %452 = vmatprep.subr.mxu0 0.0
    %453 = vmatpush1.msra.mxu0 0.0
    %454 = vmatprep.subr.mxu0 0.0
    %455 = vmatpush1.msra.mxu0 0.0
    %456 = vmatprep.subr.mxu0 0.0
    %457 = vmatpush1.msra.mxu0 0.0
    %458 = vmatprep.subr.mxu0 0.0
    %459 = vmatpush1.msra.mxu0 0.0
    %460 = vmatprep.subr.mxu0 0.0
    %461 = vmatpush1.msra.mxu0 0.0
    %462 = vmatprep.subr.mxu0 0.0
    %463 = vmatpush1.msra.mxu0 0.0
    %464 = vmatprep.subr.mxu0 0.0
    %465 = vmatpush1.msra.mxu0 0.0
    %466 = vmatprep.subr.mxu0 0.0
    %467 = vmatpush1.msra.mxu0 0.0
    %468 = vmatprep.subr.mxu0 0.0
    %469 = vmatpush1.msra.mxu0 0.0
    %470 = vmatprep.subr.mxu0 0.0
    %471 = vmatpush1.msra.mxu0 0.0
    %472 = vmatprep.subr.mxu0 0.0
    %473 = vmatpush1.msra.mxu0 0.0
    %474 = vmatprep.subr.mxu0 0.0
    %475 = vmatpush1.msra.mxu0 0.0
    %476 = vmatprep.subr.mxu0 0.0
    %477 = vmatpush1.msra.mxu0 0.0
    %478 = vmatprep.subr.mxu0 0.0
    %479 = vmatpush1.msra.mxu0 0.0
    %480 = vmatprep.subr.mxu0 0.0
    %481 = vmatpush1.msra.mxu0 0.0
    %482 = vmatprep.subr.mxu0 0.0
    %483 = vmatpush1.msra.mxu0 0.0
    %484 = vmatprep.subr.mxu0 0.0
    %485 = vmatpush1.msra.mxu0 0.0
    %486 = vmatprep.subr.mxu0 0.0
    %487 = vmatpush1.msra.mxu0 0.0
    %488 = vmatprep.subr.mxu0 0.0
    %489 = vmatpush1.msra.mxu0 0.0
    %490 = vmatprep.subr.mxu0 0.0
    %491 = vmatpush1.msra.mxu0 0.0
    %492 = vmatprep.mubr.f32.mxu0 0.0
    %493 = vmatmul.mubr.f32.gmra.mrb[0].mxu0 %v426
    %v494 = vpop.f32.mrb[0].mxu0
    %v495 = vadd.f32 0.0, %v494
    %v496 = vpop.f32.mrb[0].mxu0
    %v497 = vadd.f32 0.0, %v496
    %498 = vdwg.mxu0
    %v499 = vadd.f32 %v399, %v495
    %v500 = vadd.f32 %v400, %v497
    %501 = vrot.lane.b32.xlu0 %v24, 127
    %v502 = vpop.permute.xlu0 %501
    %503 = vrot.lane.b32.xlu0 %v25, 127
    %v504 = vpop.permute.xlu0 %503
    %vm505 = vcmp.lt.s32.totalorder %v33, 127
    %v506 = vsel %vm505, %v502, %v504
    %v507 = vsel %vm505, %v504, %v502
    %s508 = scalar_lea.vmem %s1, 5
    %v509 = vld [vmem:[%s508] ss:$8 sm:$0x3]
    %s510 = scalar_lea.vmem %s2, 40
    %v511 = vld [vmem:[%s510] sm:$0xff]
    %v513 = vlaneseq
    %v514 = vshrl.u32 %v513, 7
    %v515 = vsub.s32 0, %v514
    %v516 = vrot.slane %v509, %v515
    %v517 = vlaneseq
    %v518 = vshrl.u32 %v517, 7
    %v519 = vsub.s32 1, %v518
    %v520 = vrot.slane %v509, %v519
    %v523 = vmul.f32 %v506, %v516
    %v524 = vmul.f32 %v507, %v520
    %v526 = vsel %vm52, %v511, 0
    %528 = vmatprep.subr.mxu0 %v524
    %529 = vmatpush1.msra.mxu0 %v523
    %530 = vmatprep.subr.mxu0 0.0
    %531 = vmatpush1.msra.mxu0 0.0
    %532 = vmatprep.subr.mxu0 0.0
    %533 = vmatpush1.msra.mxu0 0.0
    %534 = vmatprep.subr.mxu0 0.0
    %535 = vmatpush1.msra.mxu0 0.0
    %536 = vmatprep.subr.mxu0 0.0
    %537 = vmatpush1.msra.mxu0 0.0
    %538 = vmatprep.subr.mxu0 0.0
    %539 = vmatpush1.msra.mxu0 0.0
    %540 = vmatprep.subr.mxu0 0.0
    %541 = vmatpush1.msra.mxu0 0.0
    %542 = vmatprep.subr.mxu0 0.0
    %543 = vmatpush1.msra.mxu0 0.0
    %544 = vmatprep.subr.mxu0 0.0
    %545 = vmatpush1.msra.mxu0 0.0
    %546 = vmatprep.subr.mxu0 0.0
    %547 = vmatpush1.msra.mxu0 0.0
    %548 = vmatprep.subr.mxu0 0.0
    %549 = vmatpush1.msra.mxu0 0.0
    %550 = vmatprep.subr.mxu0 0.0
    %551 = vmatpush1.msra.mxu0 0.0
    %552 = vmatprep.subr.mxu0 0.0
    %553 = vmatpush1.msra.mxu0 0.0
    %554 = vmatprep.subr.mxu0 0.0
    %555 = vmatpush1.msra.mxu0 0.0
    %556 = vmatprep.subr.mxu0 0.0
    %557 = vmatpush1.msra.mxu0 0.0
    %558 = vmatprep.subr.mxu0 0.0
    %559 = vmatpush1.msra.mxu0 0.0
    %560 = vmatprep.subr.mxu0 0.0
    %561 = vmatpush1.msra.mxu0 0.0
    %562 = vmatprep.subr.mxu0 0.0
    %563 = vmatpush1.msra.mxu0 0.0
    %564 = vmatprep.subr.mxu0 0.0
    %565 = vmatpush1.msra.mxu0 0.0
    %566 = vmatprep.subr.mxu0 0.0
    %567 = vmatpush1.msra.mxu0 0.0
    %568 = vmatprep.subr.mxu0 0.0
    %569 = vmatpush1.msra.mxu0 0.0
    %570 = vmatprep.subr.mxu0 0.0
    %571 = vmatpush1.msra.mxu0 0.0
    %572 = vmatprep.subr.mxu0 0.0
    %573 = vmatpush1.msra.mxu0 0.0
    %574 = vmatprep.subr.mxu0 0.0
    %575 = vmatpush1.msra.mxu0 0.0
    %576 = vmatprep.subr.mxu0 0.0
    %577 = vmatpush1.msra.mxu0 0.0
    %578 = vmatprep.subr.mxu0 0.0
    %579 = vmatpush1.msra.mxu0 0.0
    %580 = vmatprep.subr.mxu0 0.0
    %581 = vmatpush1.msra.mxu0 0.0
    %582 = vmatprep.subr.mxu0 0.0
    %583 = vmatpush1.msra.mxu0 0.0
    %584 = vmatprep.subr.mxu0 0.0
    %585 = vmatpush1.msra.mxu0 0.0
    %586 = vmatprep.subr.mxu0 0.0
    %587 = vmatpush1.msra.mxu0 0.0
    %588 = vmatprep.subr.mxu0 0.0
    %589 = vmatpush1.msra.mxu0 0.0
    %590 = vmatprep.subr.mxu0 0.0
    %591 = vmatpush1.msra.mxu0 0.0
    %592 = vmatprep.mubr.f32.mxu0 0.0
    %593 = vmatmul.mubr.f32.gmra.mrb[0].mxu0 %v526
    %v594 = vpop.f32.mrb[0].mxu0
    %v595 = vadd.f32 0.0, %v594
    %v596 = vpop.f32.mrb[0].mxu0
    %v597 = vadd.f32 0.0, %v596
    %598 = vdwg.mxu0
    %v599 = vadd.f32 %v499, %v595
    %v600 = vadd.f32 %v500, %v597
    %601 = vrot.lane.b32.xlu0 %v24, 113
    %v602 = vpop.permute.xlu0 %601
    %603 = vrot.lane.b32.xlu0 %v25, 113
    %v604 = vpop.permute.xlu0 %603
    %vm605 = vcmp.lt.s32.totalorder %v33, 113
    %v606 = vsel %vm605, %v602, %v604
    %v607 = vsel %vm605, %v604, %v602
    %s608 = scalar_lea.vmem %s1, 6
    %v609 = vld [vmem:[%s608] ss:$8 sm:$0x3]
    %s610 = scalar_lea.vmem %s2, 48
    %v611 = vld [vmem:[%s610] sm:$0xff]
    %v613 = vlaneseq
    %v614 = vshrl.u32 %v613, 7
    %v615 = vsub.s32 0, %v614
    %v616 = vrot.slane %v609, %v615
    %v617 = vlaneseq
    %v618 = vshrl.u32 %v617, 7
    %v619 = vsub.s32 1, %v618
    %v620 = vrot.slane %v609, %v619
    %v623 = vmul.f32 %v606, %v616
    %v624 = vmul.f32 %v607, %v620
    %v626 = vsel %vm52, %v611, 0
    %628 = vmatprep.subr.mxu0 %v624
    %629 = vmatpush1.msra.mxu0 %v623
    %630 = vmatprep.subr.mxu0 0.0
    %631 = vmatpush1.msra.mxu0 0.0
    %632 = vmatprep.subr.mxu0 0.0
    %633 = vmatpush1.msra.mxu0 0.0
    %634 = vmatprep.subr.mxu0 0.0
    %635 = vmatpush1.msra.mxu0 0.0
    %636 = vmatprep.subr.mxu0 0.0
    %637 = vmatpush1.msra.mxu0 0.0
    %638 = vmatprep.subr.mxu0 0.0
    %639 = vmatpush1.msra.mxu0 0.0
    %640 = vmatprep.subr.mxu0 0.0
    %641 = vmatpush1.msra.mxu0 0.0
    %642 = vmatprep.subr.mxu0 0.0
    %643 = vmatpush1.msra.mxu0 0.0
    %644 = vmatprep.subr.mxu0 0.0
    %645 = vmatpush1.msra.mxu0 0.0
    %646 = vmatprep.subr.mxu0 0.0
    %647 = vmatpush1.msra.mxu0 0.0
    %648 = vmatprep.subr.mxu0 0.0
    %649 = vmatpush1.msra.mxu0 0.0
    %650 = vmatprep.subr.mxu0 0.0
    %651 = vmatpush1.msra.mxu0 0.0
    %652 = vmatprep.subr.mxu0 0.0
    %653 = vmatpush1.msra.mxu0 0.0
    %654 = vmatprep.subr.mxu0 0.0
    %655 = vmatpush1.msra.mxu0 0.0
    %656 = vmatprep.subr.mxu0 0.0
    %657 = vmatpush1.msra.mxu0 0.0
    %658 = vmatprep.subr.mxu0 0.0
    %659 = vmatpush1.msra.mxu0 0.0
    %660 = vmatprep.subr.mxu0 0.0
    %661 = vmatpush1.msra.mxu0 0.0
    %662 = vmatprep.subr.mxu0 0.0
    %663 = vmatpush1.msra.mxu0 0.0
    %664 = vmatprep.subr.mxu0 0.0
    %665 = vmatpush1.msra.mxu0 0.0
    %666 = vmatprep.subr.mxu0 0.0
    %667 = vmatpush1.msra.mxu0 0.0
    %668 = vmatprep.subr.mxu0 0.0
    %669 = vmatpush1.msra.mxu0 0.0
    %670 = vmatprep.subr.mxu0 0.0
    %671 = vmatpush1.msra.mxu0 0.0
    %672 = vmatprep.subr.mxu0 0.0
    %673 = vmatpush1.msra.mxu0 0.0
    %674 = vmatprep.subr.mxu0 0.0
    %675 = vmatpush1.msra.mxu0 0.0
    %676 = vmatprep.subr.mxu0 0.0
    %677 = vmatpush1.msra.mxu0 0.0
    %678 = vmatprep.subr.mxu0 0.0
    %679 = vmatpush1.msra.mxu0 0.0
    %680 = vmatprep.subr.mxu0 0.0
    %681 = vmatpush1.msra.mxu0 0.0
    %682 = vmatprep.subr.mxu0 0.0
    %683 = vmatpush1.msra.mxu0 0.0
    %684 = vmatprep.subr.mxu0 0.0
    %685 = vmatpush1.msra.mxu0 0.0
    %686 = vmatprep.subr.mxu0 0.0
    %687 = vmatpush1.msra.mxu0 0.0
    %688 = vmatprep.subr.mxu0 0.0
    %689 = vmatpush1.msra.mxu0 0.0
    %690 = vmatprep.subr.mxu0 0.0
    %691 = vmatpush1.msra.mxu0 0.0
    %692 = vmatprep.mubr.f32.mxu0 0.0
    %693 = vmatmul.mubr.f32.gmra.mrb[0].mxu0 %v626
    %v694 = vpop.f32.mrb[0].mxu0
    %v695 = vadd.f32 0.0, %v694
    %v696 = vpop.f32.mrb[0].mxu0
    %v697 = vadd.f32 0.0, %v696
    %698 = vdwg.mxu0
    %v699 = vadd.f32 %v599, %v695
    %v700 = vadd.f32 %v600, %v697
    %701 = vrot.lane.b32.xlu0 %v24, 112
    %v702 = vpop.permute.xlu0 %701
    %703 = vrot.lane.b32.xlu0 %v25, 112
    %v704 = vpop.permute.xlu0 %703
    %vm705 = vcmp.lt.s32.totalorder %v33, 112
    %v706 = vsel %vm705, %v702, %v704
    %v707 = vsel %vm705, %v704, %v702
    %s708 = scalar_lea.vmem %s1, 7
    %v709 = vld [vmem:[%s708] ss:$8 sm:$0x3]
    %s710 = scalar_lea.vmem %s2, 56
    %v711 = vld [vmem:[%s710] sm:$0xff]
    %v713 = vlaneseq
    %v714 = vshrl.u32 %v713, 7
    %v715 = vsub.s32 0, %v714
    %v716 = vrot.slane %v709, %v715
    %v717 = vlaneseq
    %v718 = vshrl.u32 %v717, 7
    %v719 = vsub.s32 1, %v718
    %v720 = vrot.slane %v709, %v719
    %v723 = vmul.f32 %v706, %v716
    %v724 = vmul.f32 %v707, %v720
    %v726 = vsel %vm52, %v711, 0
    %728 = vmatprep.subr.mxu0 %v724
    %729 = vmatpush1.msra.mxu0 %v723
    %730 = vmatprep.subr.mxu0 0.0
    %731 = vmatpush1.msra.mxu0 0.0
    %732 = vmatprep.subr.mxu0 0.0
    %733 = vmatpush1.msra.mxu0 0.0
    %734 = vmatprep.subr.mxu0 0.0
    %735 = vmatpush1.msra.mxu0 0.0
    %736 = vmatprep.subr.mxu0 0.0
    %737 = vmatpush1.msra.mxu0 0.0
    %738 = vmatprep.subr.mxu0 0.0
    %739 = vmatpush1.msra.mxu0 0.0
    %740 = vmatprep.subr.mxu0 0.0
    %741 = vmatpush1.msra.mxu0 0.0
    %742 = vmatprep.subr.mxu0 0.0
    %743 = vmatpush1.msra.mxu0 0.0
    %744 = vmatprep.subr.mxu0 0.0
    %745 = vmatpush1.msra.mxu0 0.0
    %746 = vmatprep.subr.mxu0 0.0
    %747 = vmatpush1.msra.mxu0 0.0
    %748 = vmatprep.subr.mxu0 0.0
    %749 = vmatpush1.msra.mxu0 0.0
    %750 = vmatprep.subr.mxu0 0.0
    %751 = vmatpush1.msra.mxu0 0.0
    %752 = vmatprep.subr.mxu0 0.0
    %753 = vmatpush1.msra.mxu0 0.0
    %754 = vmatprep.subr.mxu0 0.0
    %755 = vmatpush1.msra.mxu0 0.0
    %756 = vmatprep.subr.mxu0 0.0
    %757 = vmatpush1.msra.mxu0 0.0
    %758 = vmatprep.subr.mxu0 0.0
    %759 = vmatpush1.msra.mxu0 0.0
    %760 = vmatprep.subr.mxu0 0.0
    %761 = vmatpush1.msra.mxu0 0.0
    %762 = vmatprep.subr.mxu0 0.0
    %763 = vmatpush1.msra.mxu0 0.0
    %764 = vmatprep.subr.mxu0 0.0
    %765 = vmatpush1.msra.mxu0 0.0
    %766 = vmatprep.subr.mxu0 0.0
    %767 = vmatpush1.msra.mxu0 0.0
    %768 = vmatprep.subr.mxu0 0.0
    %769 = vmatpush1.msra.mxu0 0.0
    %770 = vmatprep.subr.mxu0 0.0
    %771 = vmatpush1.msra.mxu0 0.0
    %772 = vmatprep.subr.mxu0 0.0
    %773 = vmatpush1.msra.mxu0 0.0
    %774 = vmatprep.subr.mxu0 0.0
    %775 = vmatpush1.msra.mxu0 0.0
    %776 = vmatprep.subr.mxu0 0.0
    %777 = vmatpush1.msra.mxu0 0.0
    %778 = vmatprep.subr.mxu0 0.0
    %779 = vmatpush1.msra.mxu0 0.0
    %780 = vmatprep.subr.mxu0 0.0
    %781 = vmatpush1.msra.mxu0 0.0
    %782 = vmatprep.subr.mxu0 0.0
    %783 = vmatpush1.msra.mxu0 0.0
    %784 = vmatprep.subr.mxu0 0.0
    %785 = vmatpush1.msra.mxu0 0.0
    %786 = vmatprep.subr.mxu0 0.0
    %787 = vmatpush1.msra.mxu0 0.0
    %788 = vmatprep.subr.mxu0 0.0
    %789 = vmatpush1.msra.mxu0 0.0
    %790 = vmatprep.subr.mxu0 0.0
    %791 = vmatpush1.msra.mxu0 0.0
    %792 = vmatprep.mubr.f32.mxu0 0.0
    %793 = vmatmul.mubr.f32.gmra.mrb[0].mxu0 %v726
    %v794 = vpop.f32.mrb[0].mxu0
    %v795 = vadd.f32 0.0, %v794
    %v796 = vpop.f32.mrb[0].mxu0
    %v797 = vadd.f32 0.0, %v796
    %798 = vdwg.mxu0
    %v799 = vadd.f32 %v699, %v795
    %v800 = vadd.f32 %v700, %v797
    %801 = vrot.lane.b32.xlu0 %v24, 111
    %v802 = vpop.permute.xlu0 %801
    %803 = vrot.lane.b32.xlu0 %v25, 111
    %v804 = vpop.permute.xlu0 %803
    %vm805 = vcmp.lt.s32.totalorder %v33, 111
    %v806 = vsel %vm805, %v802, %v804
    %v807 = vsel %vm805, %v804, %v802
    %s808 = scalar_lea.vmem %s1, 16
    %v809 = vld [vmem:[%s808] ss:$8 sm:$0x3]
    %s810 = scalar_lea.vmem %s2, 64
    %v811 = vld [vmem:[%s810] sm:$0xff]
    %v813 = vlaneseq
    %v814 = vshrl.u32 %v813, 7
    %v815 = vsub.s32 0, %v814
    %v816 = vrot.slane %v809, %v815
    %v817 = vlaneseq
    %v818 = vshrl.u32 %v817, 7
    %v819 = vsub.s32 1, %v818
    %v820 = vrot.slane %v809, %v819
    %v823 = vmul.f32 %v806, %v816
    %v824 = vmul.f32 %v807, %v820
    %v826 = vsel %vm52, %v811, 0
    %828 = vmatprep.subr.mxu0 %v824
    %829 = vmatpush1.msra.mxu0 %v823
    %830 = vmatprep.subr.mxu0 0.0
    %831 = vmatpush1.msra.mxu0 0.0
    %832 = vmatprep.subr.mxu0 0.0
    %833 = vmatpush1.msra.mxu0 0.0
    %834 = vmatprep.subr.mxu0 0.0
    %835 = vmatpush1.msra.mxu0 0.0
    %836 = vmatprep.subr.mxu0 0.0
    %837 = vmatpush1.msra.mxu0 0.0
    %838 = vmatprep.subr.mxu0 0.0
    %839 = vmatpush1.msra.mxu0 0.0
    %840 = vmatprep.subr.mxu0 0.0
    %841 = vmatpush1.msra.mxu0 0.0
    %842 = vmatprep.subr.mxu0 0.0
    %843 = vmatpush1.msra.mxu0 0.0
    %844 = vmatprep.subr.mxu0 0.0
    %845 = vmatpush1.msra.mxu0 0.0
    %846 = vmatprep.subr.mxu0 0.0
    %847 = vmatpush1.msra.mxu0 0.0
    %848 = vmatprep.subr.mxu0 0.0
    %849 = vmatpush1.msra.mxu0 0.0
    %850 = vmatprep.subr.mxu0 0.0
    %851 = vmatpush1.msra.mxu0 0.0
    %852 = vmatprep.subr.mxu0 0.0
    %853 = vmatpush1.msra.mxu0 0.0
    %854 = vmatprep.subr.mxu0 0.0
    %855 = vmatpush1.msra.mxu0 0.0
    %856 = vmatprep.subr.mxu0 0.0
    %857 = vmatpush1.msra.mxu0 0.0
    %858 = vmatprep.subr.mxu0 0.0
    %859 = vmatpush1.msra.mxu0 0.0
    %860 = vmatprep.subr.mxu0 0.0
    %861 = vmatpush1.msra.mxu0 0.0
    %862 = vmatprep.subr.mxu0 0.0
    %863 = vmatpush1.msra.mxu0 0.0
    %864 = vmatprep.subr.mxu0 0.0
    %865 = vmatpush1.msra.mxu0 0.0
    %866 = vmatprep.subr.mxu0 0.0
    %867 = vmatpush1.msra.mxu0 0.0
    %868 = vmatprep.subr.mxu0 0.0
    %869 = vmatpush1.msra.mxu0 0.0
    %870 = vmatprep.subr.mxu0 0.0
    %871 = vmatpush1.msra.mxu0 0.0
    %872 = vmatprep.subr.mxu0 0.0
    %873 = vmatpush1.msra.mxu0 0.0
    %874 = vmatprep.subr.mxu0 0.0
    %875 = vmatpush1.msra.mxu0 0.0
    %876 = vmatprep.subr.mxu0 0.0
    %877 = vmatpush1.msra.mxu0 0.0
    %878 = vmatprep.subr.mxu0 0.0
    %879 = vmatpush1.msra.mxu0 0.0
    %880 = vmatprep.subr.mxu0 0.0
    %881 = vmatpush1.msra.mxu0 0.0
    %882 = vmatprep.subr.mxu0 0.0
    %883 = vmatpush1.msra.mxu0 0.0
    %884 = vmatprep.subr.mxu0 0.0
    %885 = vmatpush1.msra.mxu0 0.0
    %886 = vmatprep.subr.mxu0 0.0
    %887 = vmatpush1.msra.mxu0 0.0
    %888 = vmatprep.subr.mxu0 0.0
    %889 = vmatpush1.msra.mxu0 0.0
    %890 = vmatprep.subr.mxu0 0.0
    %891 = vmatpush1.msra.mxu0 0.0
    %892 = vmatprep.mubr.f32.mxu0 0.0
    %893 = vmatmul.mubr.f32.gmra.mrb[0].mxu0 %v826
    %v894 = vpop.f32.mrb[0].mxu0
    %v895 = vadd.f32 0.0, %v894
    %v896 = vpop.f32.mrb[0].mxu0
    %v897 = vadd.f32 0.0, %v896
    %898 = vdwg.mxu0
    %v899 = vadd.f32 %v799, %v895
    %v900 = vadd.f32 %v800, %v897
    %v901 = vld [vmem:[%s3] sm:$0xff]
    %903 = vset.pattern.permute.xlu0 0
    %904 = vperm.xlu0 %903, %v901
    %v905 = vpop.permute.xlu0 %904
    %v907 = vadd.f32 %v899, %v905
    %v908 = vadd.f32 %v900, %v905
    %v909 = vmax.f32 %v907, 0.0
    %v910 = vmax.f32 %v908, 0.0
    %v911 = vld [vmem:[%s4] sm:$0xff]
    %v912 = vld [vmem:[%s5] sm:$0xff]
    %914 = vset.pattern.permute.xlu0 0
    %915 = vperm.xlu0 %914, %v912
    %v916 = vpop.permute.xlu0 %915
    %v919 = vsel %vm52, %v911, 0
    %921 = vmatprep.subr.mxu0 %v910
    %922 = vmatpush1.msra.mxu0 %v909
    %923 = vmatprep.subr.mxu0 0.0
    %924 = vmatpush1.msra.mxu0 0.0
    %925 = vmatprep.subr.mxu0 0.0
    %926 = vmatpush1.msra.mxu0 0.0
    %927 = vmatprep.subr.mxu0 0.0
    %928 = vmatpush1.msra.mxu0 0.0
    %929 = vmatprep.subr.mxu0 0.0
    %930 = vmatpush1.msra.mxu0 0.0
    %931 = vmatprep.subr.mxu0 0.0
    %932 = vmatpush1.msra.mxu0 0.0
    %933 = vmatprep.subr.mxu0 0.0
    %934 = vmatpush1.msra.mxu0 0.0
    %935 = vmatprep.subr.mxu0 0.0
    %936 = vmatpush1.msra.mxu0 0.0
    %937 = vmatprep.subr.mxu0 0.0
    %938 = vmatpush1.msra.mxu0 0.0
    %939 = vmatprep.subr.mxu0 0.0
    %940 = vmatpush1.msra.mxu0 0.0
    %941 = vmatprep.subr.mxu0 0.0
    %942 = vmatpush1.msra.mxu0 0.0
    %943 = vmatprep.subr.mxu0 0.0
    %944 = vmatpush1.msra.mxu0 0.0
    %945 = vmatprep.subr.mxu0 0.0
    %946 = vmatpush1.msra.mxu0 0.0
    %947 = vmatprep.subr.mxu0 0.0
    %948 = vmatpush1.msra.mxu0 0.0
    %949 = vmatprep.subr.mxu0 0.0
    %950 = vmatpush1.msra.mxu0 0.0
    %951 = vmatprep.subr.mxu0 0.0
    %952 = vmatpush1.msra.mxu0 0.0
    %953 = vmatprep.subr.mxu0 0.0
    %954 = vmatpush1.msra.mxu0 0.0
    %955 = vmatprep.subr.mxu0 0.0
    %956 = vmatpush1.msra.mxu0 0.0
    %957 = vmatprep.subr.mxu0 0.0
    %958 = vmatpush1.msra.mxu0 0.0
    %959 = vmatprep.subr.mxu0 0.0
    %960 = vmatpush1.msra.mxu0 0.0
    %961 = vmatprep.subr.mxu0 0.0
    %962 = vmatpush1.msra.mxu0 0.0
    %963 = vmatprep.subr.mxu0 0.0
    %964 = vmatpush1.msra.mxu0 0.0
    %965 = vmatprep.subr.mxu0 0.0
    %966 = vmatpush1.msra.mxu0 0.0
    %967 = vmatprep.subr.mxu0 0.0
    %968 = vmatpush1.msra.mxu0 0.0
    %969 = vmatprep.subr.mxu0 0.0
    %970 = vmatpush1.msra.mxu0 0.0
    %971 = vmatprep.subr.mxu0 0.0
    %972 = vmatpush1.msra.mxu0 0.0
    %973 = vmatprep.subr.mxu0 0.0
    %974 = vmatpush1.msra.mxu0 0.0
    %975 = vmatprep.subr.mxu0 0.0
    %976 = vmatpush1.msra.mxu0 0.0
    %977 = vmatprep.subr.mxu0 0.0
    %978 = vmatpush1.msra.mxu0 0.0
    %979 = vmatprep.subr.mxu0 0.0
    %980 = vmatpush1.msra.mxu0 0.0
    %981 = vmatprep.subr.mxu0 0.0
    %982 = vmatpush1.msra.mxu0 0.0
    %983 = vmatprep.subr.mxu0 0.0
    %984 = vmatpush1.msra.mxu0 0.0
    %985 = vmatprep.mubr.f32.mxu0 0.0
    %986 = vmatmul.mubr.f32.gmra.mrb[0].mxu0 %v919
    %v987 = vpop.f32.mrb[0].mxu0
    %v988 = vadd.f32 %v916, %v987
    %v989 = vpop.f32.mrb[0].mxu0
    %v990 = vadd.f32 %v916, %v989
    %991 = vdwg.mxu0
    %992 = vst [vmem:[#allocation2] sm:$0xff] %v988
    %993 = vst [vmem:[#allocation2 + $0x8] sm:$0xff] %v990
    // Predicated region
    $region26: #{tpu_custom_call.1} parent=1 // pred_check
      _
    $region27: #{tpu_custom_call.1} parent=1 // pred_check_branch
      %995 = sbr.rel (0) target = $region29
    $region28: #{tpu_custom_call.1} parent=1 // pred_region
      %s997 = ssub.s32 256, 256
      %998 = vsyncadd [#allocation3], %s997
      %s1000 = sshll.u32 [#allocation2], 4
      %s1001 = int_to_ptr.vmem [resolvable:$true] %s1000
      %1003 = dma.vmem_to_hbm [thread:$0]  %s1001, 256, %s6, [#allocation3]
    $region29: #{tpu_custom_call.1} parent=1 // pred_fallthru
      _
    // Predicated region
    $region30: #{tpu_custom_call.1} parent=1 // pred_check
      _
    $region31: #{tpu_custom_call.1} parent=1 // pred_check_branch
      %1005 = sbr.rel (0) target = $region33
    $region32: #{tpu_custom_call.1} parent=1 // pred_region
      %1006 = dma.done [#allocation3], 256
    $region33: #{tpu_custom_call.1} parent=1 // pred_fallthru
      _
    %1007 = vsyncpa [#allocation3], 1

</llo_original>
